<compile_context>
chip_gen: v7x
topology: tpu7x:2x2x1
jax: 0.10.0
libtpu: 0.0.40
codegen_flags: <defaults>
</compile_context>

<pallas_src>
import functools

import jax
import jax.numpy as jnp
import numpy as np
from jax.experimental import pallas as pl
from jax.experimental.pallas import tpu as pltpu


_MIN_GRID_STEPS = 8                       # keep both v7x TCs + pipeline busy
_VMEM_BLOCK_BUDGET = 32 * 1024 * 1024     # double-buffered blocks must fit here
_VMEM_LIMIT_BYTES = 48 * 1024 * 1024      # safe on v7x (64 MiB physical VMEM)


def _drop_token_kernel(sel_ref, x_ref, out_ref):
    """One (TB, T, TD) block: out[b, i, :] = sum_j sel[i, j] * x[b, j, :]."""
    tb, T, _ = x_ref.shape
    # sel is loaded once (constant block index) and kept VMEM-resident; the
    # leading-dim broadcast is cheap and feeds a batched MXU matmul.
    sel = jnp.broadcast_to(sel_ref[...], (tb, T, T))
    # sel is an exact 0/1 one-hot-per-row matrix, so emitting the MXU result
    # directly in x.dtype is lossless and skips a separate cast pass.
    out_ref[...] = jnp.einsum(
        "bij,bjd->bid", sel, x_ref[...],
        preferred_element_type=out_ref.dtype,
    )


def _choose_tiles(B, T, D, itemsize):
    """Pick (TB, TD) block sizes.

    1) Take the largest blocks (full-D contiguous slab preferred, batch folded
       in) whose double-buffered footprint fits _VMEM_BLOCK_BUDGET.
    2) Back TB off (then TD, never below 512 lanes) so the grid keeps at least
       _MIN_GRID_STEPS steps when the problem is big enough — a 1-2 step grid
       can't be split across v7x's two TensorCores or software-pipelined.
    """
    # Lane-dense TD candidates, largest first. Full D is always legal
    # (full-extent exception); sub-D tiles must be multiples of 128.
    td_cands = [D] + [t for t in (2048, 1024, 512, 256, 128) if t < D and D % t == 0]
    tb_divs = [t for t in range(B, 0, -1) if B % t == 0]    # descending divisors

    def vmem_bytes(tb, td):
        x_blk = tb * T * td * itemsize
        sel_blk = T * T * itemsize
        return 4 * x_blk + 2 * sel_blk    # 2x in + 2x out (double-buffer) + sel

    def steps(tb, td):
        return (B // tb) * pl.cdiv(D, td)

    # 1) Biggest blocks that fit the budget.
    tb, td = 1, td_cands[-1]
    found = False
    for td_c in td_cands:
        for tb_c in tb_divs:
            if vmem_bytes(tb_c, td_c) <= _VMEM_BLOCK_BUDGET:
                tb, td = tb_c, td_c
                found = True
                break
        if found:
            break

    # 2) Keep the grid busy: shrink TB first (a (TB, T, D) block stays a
    #    contiguous DMA per batch), then TD, but not below 512 lanes.
    while tb > 1 and steps(tb, td) < _MIN_GRID_STEPS:
        tb = max(t for t in tb_divs if t < tb)
    for td_c in td_cands:
        if steps(tb, td) >= _MIN_GRID_STEPS:
            break
        if td_c < td and td_c >= 512:
            td = td_c

    return tb, td


@functools.partial(jax.jit, static_argnames=("p", "training"))
def drop_token_dropout(x, seed, *, p=0.1, training=True):
    """Returns (out, num_kept, keep_mask).

    out has static shape (B, T, D); valid tokens are out[:, :num_kept, :].
    In eval mode (or p == 0) this is the identity (num_kept == T).
    """
    B, T, D = x.shape
    if (not training) or p <= 0.0:
        return x, jnp.int32(T), jnp.ones((1, T), jnp.int32)

    # Bernoulli(p) drop mask over the token axis (shared across batch &
    # features), matching torch.full_like(x[0, :, 0], p).bernoulli().
    key = jax.random.PRNGKey(seed)
    drop = jax.random.bernoulli(key, p, (T,))                # True = drop (prob p)
    keep_i = jnp.logical_not(drop).astype(jnp.int32)         # (T,) 1 = keep
    pos = (jnp.cumsum(keep_i) - 1).astype(jnp.int32)         # compacted row of token j
    n_kept = jnp.sum(keep_i).astype(jnp.int32)

    # (T, T) 0/1 compaction matrix, built once here (not per grid step):
    # sel[i, j] = 1 iff token j is kept and lands on compacted row i.
    row_ids = jnp.arange(T, dtype=jnp.int32)[:, None]        # (T, 1)
    sel = ((pos[None, :] == row_ids) & (keep_i[None, :] == 1)).astype(x.dtype)

    itemsize = jnp.dtype(x.dtype).itemsize
    tb, td = _choose_tiles(B, T, D, itemsize)
    grid = (B // tb, pl.cdiv(D, td))

    cost = pl.CostEstimate(
        flops=2 * B * T * T * D,
        transcendentals=0,
        bytes_accessed=2 * B * T * D * itemsize + T * T * itemsize,
    )

    out = pl.pallas_call(
        _drop_token_kernel,
        out_shape=jax.ShapeDtypeStruct((B, T, D), x.dtype),
        grid=grid,
        in_specs=[
            pl.BlockSpec((T, T), lambda b, d: (0, 0)),           # sel: VMEM-resident
            pl.BlockSpec((tb, T, td), lambda b, d: (b, 0, d)),   # x block
        ],
        out_specs=pl.BlockSpec((tb, T, td), lambda b, d: (b, 0, d)),
        compiler_params=pltpu.CompilerParams(
            dimension_semantics=("parallel", "parallel"),
            vmem_limit_bytes=_VMEM_LIMIT_BYTES,
        ),
        cost_estimate=cost,
    )(sel, x)

    return out, n_kept, keep_i.reshape(1, T)


if __name__ == "__main__":
    key = jax.random.PRNGKey(0)
    B, T, D = 2, 8, 32                      # (batch, tokens, hidden)
    x = jax.random.normal(key, (B, T, D), dtype=jnp.float32)

    p = 0.3
    out, n_kept, mask = drop_token_dropout(x, seed=0, p=p, training=True)
    out = jax.block_until_ready(out)
    n_kept = int(jax.device_get(n_kept))
    mask_np = np.asarray(jax.device_get(mask))[0]

    # Host-side reference of the compaction given the drawn mask:
    # torch does x[:, ~zero_mask, :]; kept tokens are compacted to the front.
    x_np = np.asarray(jax.device_get(x))
    kept_idx = np.nonzero(mask_np == 1)[0]
    ref = np.zeros_like(x_np)
    ref[:, : len(kept_idx), :] = x_np[:, kept_idx, :]

    assert n_kept == len(kept_idx), (n_kept, len(kept_idx))
    assert np.allclose(np.asarray(jax.device_get(out)), ref, atol=1e-5, rtol=1e-5)

    # eval-mode path is identity
    out_eval, n_eval, _ = drop_token_dropout(x, seed=0, p=p, training=False)
    assert int(n_eval) == T
    assert np.allclose(np.asarray(jax.device_get(out_eval)), x_np)

    print("KERNEL_OK")
</pallas_src>

<mosaic_0001>
module attributes {stable_mosaic.version = 11 : i64} {
  func.func @_drop_token_kernel(%arg0: i32, %arg1: i32, %arg2: memref<8x8xf32, #tpu.memory_space<vmem>>, %arg3: memref<1x8x32xf32, #tpu.memory_space<vmem>>, %arg4: memref<1x8x32xf32, #tpu.memory_space<vmem>>) attributes {dimension_semantics = [#tpu.dimension_semantics<parallel>, #tpu.dimension_semantics<parallel>], iteration_bounds = array<i64: 2, 1>, scalar_prefetch = 0 : i64, scratch_operands = 0 : i64, tpu.core_type = #tpu.core_type<tc>, window_params = [{pipeline_mode = #tpu.pipeline_mode<synchronous>, transform_indices = @transform_0, window_bounds = array<i64: 8, 8>}, {transform_indices = @transform_1, window_bounds = array<i64: 1, 8, 32>}, {transform_indices = @transform_2, window_bounds = array<i64: 1, 8, 32>}]} {
    %c0 = arith.constant 0 : index
    %c0_0 = arith.constant 0 : index
    %0 = vector.load %arg2[%c0, %c0_0] : memref<8x8xf32, #tpu.memory_space<vmem>>, vector<8x8xf32>
    %1 = vector.shape_cast %0 : vector<8x8xf32> to vector<1x8x8xf32>
    %c0_1 = arith.constant 0 : index
    %c0_2 = arith.constant 0 : index
    %c0_3 = arith.constant 0 : index
    %2 = vector.load %arg3[%c0_1, %c0_2, %c0_3] : memref<1x8x32xf32, #tpu.memory_space<vmem>>, vector<1x8x32xf32>
    "tpu.trace_start"() <{level = 10 : i32, message = "bij,bjd->bid"}> : () -> ()
    %cst = arith.constant dense<0.000000e+00> : vector<1x8x32xf32>
    %3 = tpu.matmul %1, %2, %cst {dimension_numbers = #tpu.dot_dimension_numbers<[2], [1], [1], [2], [0, 0, 0, 1, 1, 2], [0], [0]>} : vector<1x8x8xf32>, vector<1x8x32xf32>, vector<1x8x32xf32> -> vector<1x8x32xf32>
    "tpu.trace_stop"() : () -> ()
    %c0_4 = arith.constant 0 : index
    %c0_5 = arith.constant 0 : index
    %c0_6 = arith.constant 0 : index
    %4 = vector.load %arg4[%c0_4, %c0_5, %c0_6] : memref<1x8x32xf32, #tpu.memory_space<vmem>>, vector<1x8x32xf32>
    tpu.vector_store %arg4[%c0_4, %c0_5, %c0_6], %3 {strides = array<i32>} : memref<1x8x32xf32, #tpu.memory_space<vmem>>, vector<1x8x32xf32>,
    return
  }
  func.func @transform_0(%arg0: i32, %arg1: i32) -> (i32, i32) {
    %c0_i32 = arith.constant 0 : i32
    %c0_i32_0 = arith.constant 0 : i32
    %c0_i32_1 = arith.constant 0 : i32
    return %c0_i32, %c0_i32_0 : i32, i32
  }
  func.func @transform_1(%arg0: i32, %arg1: i32) -> (i32, i32, i32) {
    %c0_i32 = arith.constant 0 : i32
    %c0_i32_0 = arith.constant 0 : i32
    return %arg0, %c0_i32, %arg1 : i32, i32, i32
  }
  func.func @transform_2(%arg0: i32, %arg1: i32) -> (i32, i32, i32) {
    %c0_i32 = arith.constant 0 : i32
    %c0_i32_0 = arith.constant 0 : i32
    return %arg0, %c0_i32, %arg1 : i32, i32, i32
  }
}

</mosaic_0001>

<llo_original>
// kernel: drop_token_dropout.1
$region0: #{drop_token_dropout.1}
  #allocation0 [shape = 'u32[]', space=smem, size = 0x4, offset = 0x4, fixed_abs, tag = 'smem constant byte address 0x4 - core index']
  #allocation1 [shape = 'u32[144,128]{1,0:T(1,128)}', space=vmem, size = 0x12000, scoped, tag = 'internal scratch']
  %s0 = inlined_call_operand.vmem [shape: f32[8,8], index: 0, kind: input, shape index: {}]
  %s1 = inlined_call_operand.vmem [shape: f32[2,8,32], index: 1, kind: input, shape index: {}]
  %s2 = inlined_call_operand.hbm [shape: f32[2,8,32], index: 2, kind: output, shape index: {}]
  %s3 = sld [smem:[#allocation0]]
  $region41: #{drop_token_dropout.1} parent=0
    _
  %s5 = ssub.s32 1, %s3
  %s6 = scalar_select 0, %s5, %s3
  $region1: #{drop_token_dropout.1} parent=0
    #allocation2 [shape = 'u8[8192]{0}', space=vmem, size = 0x2000, scoped, tag = 'output window, operand 0']
    #allocation3 [shape = 's32[2]{0}', space=sflag, size = 0x8, scoped, tag = 'scoped memory for drop_token_dropout.1']
    %7 = vsyncpa [#allocation3], 0
    %s8 = scalar_lea.sflag [#allocation3], 1
    %9 = vsyncpa %s8, 0
    loop: start=0, step=1, limit=4
    $region2: #{drop_token_dropout.1} parent=1 // loop_pre_header
      _
    $region3: #{drop_token_dropout.1} parent=1 // loop_header
      %s11 = sphi 0, %s15
      %p12 = scmp.ge.s32.totalorder %s11, 4
      %s18 = sphi 0, %s30
      %s19 = sphi 0, %s26
      %s20 = sphi 0, %s18
      %s21 = sphi 0, %s19
      %s22 = sphi 0, %s20
      %s23 = sphi 0, %s21
      %s31 = sphi 0, %s31
      %s33 = sphi 0, %s31
      %s34 = sphi 0, %s33
      %s48 = sphi 0, %s34
      %s56 = sphi 0, %s58
      %s59 = sphi 0, %s56
      %s60 = sphi 0, %s59
      %s76 = sphi 0, %s60
      %s84 = sphi 0, %s86
      %s87 = sphi 0, %s84
      %s88 = sphi 0, %s87
      %s104 = sphi 0, %s88
    $region4: #{drop_token_dropout.1} parent=1 // loop_header_branch
      %14 = sbr.rel (%p12) target = $region8
    $region5: #{drop_token_dropout.1} parent=1 // loop_body
      %s16 = ssub.s32 %s11, 1
      %s17 = ssub.s32 %s11, 2
      %s24 = sadd.s32 1, %s19
      %p25 = scmp.ge.s32.totalorder %s24, 1
      %s26 = scalar_select %p25, 0, %s24
      %s27 = sadd.s32 1, %s18
      %s28 = scalar_select %p25, %s27, %s18
      %p29 = scmp.ge.s32.totalorder %s28, 2
      %s30 = scalar_select %p29, 0, %s28
      %s32 = sadd.s32 %s31, 1
      %p35 = scmp.eq.s32.totalorder %s11, 1
      %p36 = scmp.ne.s32.totalorder %s31, %s33
      %p37 = scmp.eq.s32.totalorder %s11, 0
      %p38 = por %p36, %p37
      %p39 = scmp.ne.s32.totalorder %s31, %s33
      %p40 = scmp.eq.s32.totalorder %s16, 1
      %p41 = por %p39, %p40
      %p42 = scmp.ne.s32.totalorder %s33, %s34
      %p43 = scmp.eq.s32.totalorder %s16, 0
      %p44 = por %p42, %p43
      %p45 = scmp.ne.s32.totalorder %s33, %s34
      %p46 = scmp.eq.s32.totalorder %s17, 1
      %p47 = por %p45, %p46
      %p49 = scmp.ne.s32.totalorder %s34, %s48
      %p50 = scmp.eq.s32.totalorder %s17, 0
      %p51 = por %p49, %p50
      %s52 = ssub.s32 %s18, %s30
      %s53 = ssub.s32 %s19, %s26
      %s54 = sor.u32 %s52, %s53
      %p55 = scmp.eq.s32.totalorder %s54, 0
      %s57 = sadd.s32 %s56, 1
      %s58 = scalar_select %p55, %s56, %s57
      %p61 = pneg %p55
      %p62 = scmp.eq.s32.totalorder %s11, 1
      %p63 = por %p61, %p62
      %p64 = scmp.ne.s32.totalorder %s56, %s59
      %p65 = scmp.eq.s32.totalorder %s11, 0
      %p66 = por %p64, %p65
      %p67 = scmp.ne.s32.totalorder %s56, %s59
      %p68 = scmp.eq.s32.totalorder %s16, 1
      %p69 = por %p67, %p68
      %p70 = scmp.ne.s32.totalorder %s59, %s60
      %p71 = scmp.eq.s32.totalorder %s16, 0
      %p72 = por %p70, %p71
      %p73 = scmp.ne.s32.totalorder %s59, %s60
      %p74 = scmp.eq.s32.totalorder %s17, 1
      %p75 = por %p73, %p74
      %p77 = scmp.ne.s32.totalorder %s60, %s76
      %p78 = scmp.eq.s32.totalorder %s17, 0
      %p79 = por %p77, %p78
      %s80 = ssub.s32 %s18, %s30
      %s81 = ssub.s32 %s19, %s26
      %s82 = sor.u32 %s80, %s81
      %p83 = scmp.eq.s32.totalorder %s82, 0
      %s85 = sadd.s32 %s84, 1
      %s86 = scalar_select %p83, %s84, %s85
      %p89 = pneg %p83
      %p90 = scmp.eq.s32.totalorder %s11, 1
      %p91 = por %p89, %p90
      %p92 = scmp.ne.s32.totalorder %s84, %s87
      %p93 = scmp.eq.s32.totalorder %s11, 0
      %p94 = por %p92, %p93
      %p95 = scmp.ne.s32.totalorder %s84, %s87
      %p96 = scmp.eq.s32.totalorder %s16, 1
      %p97 = por %p95, %p96
      %p98 = scmp.ne.s32.totalorder %s87, %s88
      %p99 = scmp.eq.s32.totalorder %s16, 0
      %p100 = por %p98, %p99
      %p101 = scmp.ne.s32.totalorder %s87, %s88
      %p102 = scmp.eq.s32.totalorder %s17, 1
      %p103 = por %p101, %p102
      %p105 = scmp.ne.s32.totalorder %s88, %s104
      %p106 = scmp.eq.s32.totalorder %s17, 0
      %p107 = por %p105, %p106
      %p108 = scmp.le.s32.totalorder 1, %s11
      %p109 = scmp.lt.s32.totalorder %s11, 3
      %p110 = pnand %p108, %p109
      %p111 = pneg %p110
      // Predicated region
      $region9: #{drop_token_dropout.1} parent=5 // pred_check
        _
      $region10: #{drop_token_dropout.1} parent=5 // pred_check_branch
        %113 = sbr.rel (%p110) target = $region12
      $region11: #{drop_token_dropout.1} parent=5 // pred_region
        %s114 = ssub.s32 %s11, 1
        // Predicated region
        $region13: #{drop_token_dropout.1} parent=11 // pred_check
          %p115 = pneg %p44
        $region14: #{drop_token_dropout.1} parent=11 // pred_check_branch
          %117 = sbr.rel (%p115) target = $region16
        $region15: #{drop_token_dropout.1} parent=11 // pred_region
          _
        $region16: #{drop_token_dropout.1} parent=11 // pred_fallthru
          _
      $region12: #{drop_token_dropout.1} parent=5 // pred_fallthru
        _
      %p118 = scmp.lt.s32.totalorder %s11, 2
      // Predicated region
      $region17: #{drop_token_dropout.1} parent=5 // pred_check
        %p119 = pneg %p118
      $region18: #{drop_token_dropout.1} parent=5 // pred_check_branch
        %121 = sbr.rel (%p119) target = $region20
      $region19: #{drop_token_dropout.1} parent=5 // pred_region
        // Predicated region
        $region21: #{drop_token_dropout.1} parent=19 // pred_check
          %p122 = pneg %p66
        $region22: #{drop_token_dropout.1} parent=19 // pred_check_branch
          %124 = sbr.rel (%p122) target = $region24
        $region23: #{drop_token_dropout.1} parent=19 // pred_region
          %p125 = scmp.lt.s32.totalorder %s18, 1
          %s126 = scalar_select %p125, %s18, 1
          %p127 = scmp.lt.s32.totalorder %s19, 0
          %s128 = scalar_select %p127, %s19, 0
          %s129 = sadd.s32 %s128, %s126
          %s130 = smul.addr %s129, 8
          %s131 = scalar_lea.vmem %s1, %s130
        $region24: #{drop_token_dropout.1} parent=19 // pred_fallthru
          _
      $region20: #{drop_token_dropout.1} parent=5 // pred_fallthru
        _
      %p132 = scmp.le.s32.totalorder 1, %s11
      %p133 = scmp.lt.s32.totalorder %s11, 3
      %p134 = pnand %p132, %p133
      %p135 = pneg %p134
      // Predicated region
      $region25: #{drop_token_dropout.1} parent=5 // pred_check
        _
      $region26: #{drop_token_dropout.1} parent=5 // pred_check_branch
        %137 = sbr.rel (%p134) target = $region28
      $region27: #{drop_token_dropout.1} parent=5 // pred_region
        %s138 = ssub.s32 %s11, 1
        %p139 = pneg %p44
        %p140 = pneg %p41
        %p141 = scmp.lt.s32.totalorder %s20, 1
        %s142 = scalar_select %p141, %s20, 1
        %p143 = scmp.lt.s32.totalorder %s21, 0
        %s144 = scalar_select %p143, %s21, 0
        %s145 = sadd.s32 %s144, %s142
        %s146 = smul.addr %s145, 8
        %s147 = scalar_lea.vmem %s1, %s146
        %p148 = pneg %p72
        %p149 = pneg %p69
        %p150 = pneg %p100
        %p151 = pneg %p97
        %s152 = sand.u32 %s87, 1
        %s153 = scalar_lea.sflag [#allocation3], %s152
        %s154 = sand.u32 %s87, 1
        %s155 = smul.addr %s154, 8
        %s156 = scalar_lea.vmem [#allocation2], %s155
        %p157 = scmp.lt.s32.totalorder %s20, 1
        %s158 = scalar_select %p157, %s20, 1
        %p159 = scmp.lt.s32.totalorder %s21, 0
        %s160 = scalar_select %p159, %s21, 0
        %s161 = sadd.s32 %s160, %s158
        %s162 = smul.addr %s161, 8
        %s163 = scalar_lea.vmem %s1, %s162
        %v164 = vld [vmem:[%s0] sm:$0xff]
        %v165 = vld [vmem:[%s163] sm:$0xff]
        %vm166 = vcmask 64512
        %v168 = vsel %vm166, %v164, 0
        %170 = vmatprep.subr.mxu0 0.0
        %171 = vmatpush1.msra.mxu0 %v165
        %172 = vmatprep.subr.mxu0 0.0
        %173 = vmatpush1.msra.mxu0 0.0
        %174 = vmatprep.subr.mxu0 0.0
        %175 = vmatpush1.msra.mxu0 0.0
        %176 = vmatprep.subr.mxu0 0.0
        %177 = vmatpush1.msra.mxu0 0.0
        %178 = vmatprep.subr.mxu0 0.0
        %179 = vmatpush1.msra.mxu0 0.0
        %180 = vmatprep.subr.mxu0 0.0
        %181 = vmatpush1.msra.mxu0 0.0
        %182 = vmatprep.subr.mxu0 0.0
        %183 = vmatpush1.msra.mxu0 0.0
        %184 = vmatprep.subr.mxu0 0.0
        %185 = vmatpush1.msra.mxu0 0.0
        %186 = vmatprep.subr.mxu0 0.0
        %187 = vmatpush1.msra.mxu0 0.0
        %188 = vmatprep.subr.mxu0 0.0
        %189 = vmatpush1.msra.mxu0 0.0
        %190 = vmatprep.subr.mxu0 0.0
        %191 = vmatpush1.msra.mxu0 0.0
        %192 = vmatprep.subr.mxu0 0.0
        %193 = vmatpush1.msra.mxu0 0.0
        %194 = vmatprep.subr.mxu0 0.0
        %195 = vmatpush1.msra.mxu0 0.0
        %196 = vmatprep.subr.mxu0 0.0
        %197 = vmatpush1.msra.mxu0 0.0
        %198 = vmatprep.subr.mxu0 0.0
        %199 = vmatpush1.msra.mxu0 0.0
        %200 = vmatprep.subr.mxu0 0.0
        %201 = vmatpush1.msra.mxu0 0.0
        %202 = vmatprep.subr.mxu0 0.0
        %203 = vmatpush1.msra.mxu0 0.0
        %204 = vmatprep.subr.mxu0 0.0
        %205 = vmatpush1.msra.mxu0 0.0
        %206 = vmatprep.subr.mxu0 0.0
        %207 = vmatpush1.msra.mxu0 0.0
        %208 = vmatprep.subr.mxu0 0.0
        %209 = vmatpush1.msra.mxu0 0.0
        %210 = vmatprep.subr.mxu0 0.0
        %211 = vmatpush1.msra.mxu0 0.0
        %212 = vmatprep.subr.mxu0 0.0
        %213 = vmatpush1.msra.mxu0 0.0
        %214 = vmatprep.subr.mxu0 0.0
        %215 = vmatpush1.msra.mxu0 0.0
        %216 = vmatprep.subr.mxu0 0.0
        %217 = vmatpush1.msra.mxu0 0.0
        %218 = vmatprep.subr.mxu0 0.0
        %219 = vmatpush1.msra.mxu0 0.0
        %220 = vmatprep.subr.mxu0 0.0
        %221 = vmatpush1.msra.mxu0 0.0
        %222 = vmatprep.subr.mxu0 0.0
        %223 = vmatpush1.msra.mxu0 0.0
        %224 = vmatprep.subr.mxu0 0.0
        %225 = vmatpush1.msra.mxu0 0.0
        %226 = vmatprep.subr.mxu0 0.0
        %227 = vmatpush1.msra.mxu0 0.0
        %228 = vmatprep.subr.mxu0 0.0
        %229 = vmatpush1.msra.mxu0 0.0
        %230 = vmatprep.subr.mxu0 0.0
        %231 = vmatpush1.msra.mxu0 0.0
        %232 = vmatprep.subr.mxu0 0.0
        %233 = vmatpush1.msra.mxu0 0.0
        %234 = vmatprep.mubr.f32.mxu0 0.0
        %235 = vmatmul.mubr.f32.gmra.mrb[0].mxu0 %v168
        %v236 = vpop.f32.mrb[0].mxu0
        %v237 = vadd.f32 0.0, %v236
        %v238 = vpop.f32.mrb[0].mxu0
        %239 = vdwg.mxu0
        %vm240 = vcmask 261120
        %241 = vst.msk [vmem:[%s156] sm:$0xff] %vm240, %v237
        %s242 = sand.u32 %s87, 1
        %s243 = scalar_lea.sflag [#allocation3], %s242
        %s244 = sand.u32 %s87, 1
        %s245 = smul.addr %s244, 8
        %s246 = scalar_lea.vmem [#allocation2], %s245
        // Predicated region
        $region29: #{drop_token_dropout.1} parent=27 // pred_check
          %p247 = pneg %p97
        $region30: #{drop_token_dropout.1} parent=27 // pred_check_branch
          %249 = sbr.rel (%p247) target = $region32
        $region31: #{drop_token_dropout.1} parent=27 // pred_region
          %s251 = ssub.s32 128, 128
          %252 = vsyncadd %s243, %s251
          %s253 = sadd.s32 %s21, %s20
          %s254 = smul.addr %s253, 128
          %s255 = scalar_lea.hbm %s2, %s254
          %s257 = sshll.u32 %s246, 4
          %s258 = int_to_ptr.vmem [resolvable:$true] %s257
          %260 = dma.vmem_to_hbm [thread:$0]  %s258, 128, %s255, %s243
        $region32: #{drop_token_dropout.1} parent=27 // pred_fallthru
          _
      $region28: #{drop_token_dropout.1} parent=5 // pred_fallthru
        _
      %p261 = scmp.le.s32.totalorder 2, %s11
      // Predicated region
      $region33: #{drop_token_dropout.1} parent=5 // pred_check
        %p262 = pneg %p261
      $region34: #{drop_token_dropout.1} parent=5 // pred_check_branch
        %264 = sbr.rel (%p262) target = $region36
      $region35: #{drop_token_dropout.1} parent=5 // pred_region
        %s265 = ssub.s32 %s11, 2
        // Predicated region
        $region37: #{drop_token_dropout.1} parent=35 // pred_check
          %p266 = pneg %p103
        $region38: #{drop_token_dropout.1} parent=35 // pred_check_branch
          %268 = sbr.rel (%p266) target = $region40
        $region39: #{drop_token_dropout.1} parent=35 // pred_region
          %s269 = sand.u32 %s88, 1
          %s270 = scalar_lea.sflag [#allocation3], %s269
          %s271 = sand.u32 %s88, 1
          %s272 = smul.addr %s271, 8
          %s273 = scalar_lea.vmem [#allocation2], %s272
          %274 = dma.done %s270, 128
        $region40: #{drop_token_dropout.1} parent=35 // pred_fallthru
          _
      $region36: #{drop_token_dropout.1} parent=5 // pred_fallthru
        _
    $region6: #{drop_token_dropout.1} parent=1 // loop_footer
      %s15 = sadd.s32 1, %s11
    $region7: #{drop_token_dropout.1} parent=1 // loop_footer_branch
      %10 = sbr.rel target = $region3
    $region8: #{drop_token_dropout.1} parent=1 // loop_exit
      _
    %275 = vsyncpa [#allocation3], 1
    %s276 = scalar_lea.sflag [#allocation3], 1
    %277 = vsyncpa %s276, 1

</llo_original>
